<compile_context>
chip_gen: v5e
topology: v5e:2x2
jax: 0.10.0
libtpu: 0.0.40
codegen_flags: <defaults>
</compile_context>

<pallas_src>
import math
from dataclasses import dataclass
from functools import partial

import numpy as np
import jax
import jax.numpy as jnp
from jax.experimental import pallas as pl
from jax.experimental.pallas import tpu as pltpu


# ----------------------------------------------------------------------------
# Config (frozen -> hashable -> usable as a static jit argument)
# ----------------------------------------------------------------------------
@dataclass(frozen=True)
class MelSpectrogramConfig:
    sr: int = 16000
    n_fft: int = 256
    win_length: int = 256
    hop_length: int = 64
    f_min: float = 0.0
    f_max: float = 8000.0
    n_mels: int = 32
    power: float = 1.0


# ----------------------------------------------------------------------------
# Deterministic parameter construction (librosa slaney-mel basis, hann window,
# fused windowed real-DFT matrix). Pure numpy, built once at trace time.
# ----------------------------------------------------------------------------
def _hz_to_mel(f):
    f = np.asarray(f, dtype=np.float64)
    f_sp = 200.0 / 3.0
    mels = f / f_sp
    min_log_hz = 1000.0
    min_log_mel = min_log_hz / f_sp
    logstep = np.log(6.4) / 27.0
    return np.where(
        f >= min_log_hz,
        min_log_mel + np.log(np.maximum(f, min_log_hz) / min_log_hz) / logstep,
        mels,
    )


def _mel_to_hz(m):
    m = np.asarray(m, dtype=np.float64)
    f_sp = 200.0 / 3.0
    freqs = f_sp * m
    min_log_hz = 1000.0
    min_log_mel = min_log_hz / f_sp
    logstep = np.log(6.4) / 27.0
    return np.where(
        m >= min_log_mel, min_log_hz * np.exp(logstep * (m - min_log_mel)), freqs
    )


def mel_filterbank(sr, n_fft, n_mels, fmin, fmax):
    """librosa.filters.mel (htk=False, norm='slaney') -> (n_mels, n_freqs)."""
    n_freqs = n_fft // 2 + 1
    fftfreqs = np.linspace(0.0, sr / 2.0, n_freqs)
    mel_pts = _mel_to_hz(np.linspace(_hz_to_mel(fmin), _hz_to_mel(fmax), n_mels + 2))
    fdiff = np.diff(mel_pts)
    ramps = mel_pts[:, None] - fftfreqs[None, :]
    lower = -ramps[:-2] / fdiff[:-1, None]
    upper = ramps[2:] / fdiff[1:, None]
    weights = np.maximum(0.0, np.minimum(lower, upper))
    enorm = 2.0 / (mel_pts[2 : n_mels + 2] - mel_pts[:n_mels])
    weights = weights * enorm[:, None]
    return weights.astype(np.float32)


def build_mel_params(cfg: MelSpectrogramConfig):
    n_fft = cfg.n_fft
    n_freqs = n_fft // 2 + 1

    # periodic hann window (torch.hann_window default), center-padded to n_fft
    win = 0.5 - 0.5 * np.cos(
        2.0 * np.pi * np.arange(cfg.win_length) / cfg.win_length
    )
    window = np.zeros(n_fft, dtype=np.float64)
    lp = (n_fft - cfg.win_length) // 2
    window[lp : lp + cfg.win_length] = win

    fb_full = mel_filterbank(cfg.sr, n_fft, cfg.n_mels, cfg.f_min, cfg.f_max)  # (M, n_freqs)

    # Frequency axis sizing: drop bins >= 128 only when their mel weights are
    # exactly zero (true for slaney mel with f_max <= sr/2 -> the only dropped
    # bin is the Nyquist bin with an all-zero fb column).  Otherwise keep the
    # full zero-padded axis; the padded freq columns carry zero fb weight so
    # they never contribute to the mel output.
    if n_freqs > 128 and np.max(np.abs(fb_full[:, 128:])) == 0.0:
        F = 128
    else:
        F = ((n_freqs + 127) // 128) * 128
    n_keep = min(n_freqs, F)

    # fused windowed real-DFT weight: [cos | sin] -> (n_fft, 2F), one MXU matmul
    k = np.arange(n_keep)
    ang = 2.0 * np.pi * np.outer(np.arange(n_fft), k) / n_fft
    cos_m = np.pad(window[:, None] * np.cos(ang), ((0, 0), (0, F - n_keep)))
    sin_m = np.pad(window[:, None] * np.sin(ang), ((0, 0), (0, F - n_keep)))
    dft = np.concatenate([cos_m, sin_m], axis=1)  # (n_fft, 2F)

    # mel basis in (n_mels, F) layout -> second matmul directly produces the
    # transposed (n_mels, TM) output tile.
    fb_t = np.zeros((cfg.n_mels, F), dtype=np.float64)
    fb_t[:, :n_keep] = fb_full[:, :n_keep]

    # bf16 operands (f32 accumulation happens inside the kernel)
    return (
        jnp.asarray(dft, dtype=jnp.bfloat16),
        jnp.asarray(fb_t, dtype=jnp.bfloat16),
        F,
    )


# ----------------------------------------------------------------------------
# Pallas kernel: per tile of TM frames of one batch element,
#   frames  = assemble overlapping windows from (TM+ratio, hop) chunks (VMEM)
#   y       = frames @ [cos|sin]           (bf16 MXU, f32 acc)
#   psd_t   = (re^2 + im^2)^T              (VPU + XLU transpose)
#   spec_t  = psd_t^(power/2)              (EUP)
#   mel_t   = fb_t @ spec_t                (bf16 MXU, f32 acc, N = TM)
#   out     = log(max(mel_t, 1e-5))        (lane-dense (n_mels, TM) store)
# ----------------------------------------------------------------------------
def mel_kernel(chunks_ref, halo_ref, dft_ref, fbt_ref, out_ref, *, power, n_freq, ratio):
    body = chunks_ref[...]                        # (TM, hop) f32
    halo = halo_ref[...]                          # (ratio, hop) f32
    tm = body.shape[0]

    # In-VMEM frame assembly:  allc[j] == chunk (tile_start + j),
    # frame[r] == chunks[tile_start + r : tile_start + r + ratio] flattened.
    allc = jnp.concatenate([body, halo], axis=0)                      # (TM+ratio, hop)
    frames = jnp.concatenate(
        [allc[s : s + tm, :] for s in range(ratio)], axis=1
    ).astype(jnp.bfloat16)                                            # (TM, n_fft)

    # Windowed real DFT: one MXU matmul against the fused [cos | sin] weight.
    y = jnp.dot(frames, dft_ref[...], preferred_element_type=jnp.float32)  # (TM, 2F)
    re = y[:, :n_freq]
    im = y[:, n_freq:]
    psd_t = jnp.transpose(re * re + im * im)                          # (F, TM) f32
    if power == 2.0:
        spec_t = psd_t
    elif power == 1.0:
        spec_t = jnp.sqrt(psd_t)
    else:
        spec_t = jnp.power(psd_t, 0.5 * power)

    # Mel projection with TM on the MXU output axis; result is already in the
    # (n_mels, TM) layout of the lane-dense output block.
    mel_t = jnp.dot(
        fbt_ref[...], spec_t.astype(jnp.bfloat16),
        preferred_element_type=jnp.float32,
    )                                                                 # (n_mels, TM)
    out_ref[...] = jnp.log(jnp.maximum(mel_t, 1e-5))


@partial(jax.jit, static_argnames=("cfg",))
def mel_spectrogram(audio: jnp.ndarray, cfg: MelSpectrogramConfig) -> jnp.ndarray:
    """audio: (B, T) float32 -> log-mel (B, n_mels, n_frames) float32."""
    dft, fb_t, F = build_mel_params(cfg)
    n_fft, hop, n_mels = cfg.n_fft, cfg.hop_length, cfg.n_mels
    if n_fft % hop != 0:
        # TODO(synk): gather-based frame extraction path for hop not dividing n_fft.
        raise NotImplementedError("kernel assumes hop_length divides n_fft")
    ratio = n_fft // hop

    B, T = audio.shape
    pad = n_fft // 2
    if T <= pad:
        raise ValueError(f"reflect padding requires T > n_fft // 2 ({pad})")

    # center=True, pad_mode="reflect" (torch.stft defaults used by torchaudio)
    padded = jnp.pad(audio.astype(jnp.float32), ((0, 0), (pad, pad)), mode="reflect")
    n_frames = 1 + T // hop

    # Frame-tile size TM: a multiple of 128 (lane-dense output stores) and
    # <= n_frames so the output array needs no frame padding (the ragged last
    # block is handled by Pallas' masked store).  Cap 1024 keeps VMEM small and
    # leaves multiple grid steps for v7x's two TensorCores; no forced 2-way
    # split for small inputs (pure overhead on single-TC v5e/v6e).
    if n_frames >= 128:
        n_tiles = pl.cdiv(n_frames, 1024)
        TM = min(
            128 * pl.cdiv(pl.cdiv(n_frames, n_tiles), 128),
            128 * (n_frames // 128),
        )
        n_tiles = pl.cdiv(n_frames, TM)
        out_frames = n_frames
    else:
        TM = ((n_frames + 7) // 8) * 8          # sublane-aligned single tile
        n_tiles = 1
        out_frames = TM                          # sliced back to n_frames below

    # Chunk view of the padded audio (chunk c = samples [c*hop, (c+1)*hop)),
    # zero-padded to whole tiles, plus a tiny per-tile halo holding the `ratio`
    # chunks that immediately follow each tile's body (frame overlap).
    n_chunks = n_tiles * TM + ratio
    padded = jnp.pad(padded, ((0, 0), (0, n_chunks * hop - padded.shape[1])))
    chunks = padded.reshape(B, n_chunks, hop)
    halo_idx = (np.arange(n_tiles) + 1)[:, None] * TM + np.arange(ratio)[None, :]
    halo = chunks[:, halo_idx, :]                # (B, n_tiles, ratio, hop)

    rows = B * n_tiles * TM
    flops = 2 * rows * n_fft * (2 * F) + 2 * rows * F * n_mels + 3 * rows * F
    transcendentals = rows * n_mels + (0 if cfg.power == 2.0 else rows * F)
    bytes_accessed = (
        (chunks.size + halo.size) * 4
        + dft.size * 2 + fb_t.size * 2
        + B * n_mels * out_frames * 4
    )

    # NOTE: dft / fb_t have constant index maps so they are DMA'd only once; we
    # keep the default buffering (pl.Buffered(1) would only save ~140 KiB VMEM).
    out = pl.pallas_call(
        partial(mel_kernel, power=float(cfg.power), n_freq=F, ratio=ratio),
        out_shape=jax.ShapeDtypeStruct((B, n_mels, out_frames), jnp.float32),
        grid_spec=pltpu.PrefetchScalarGridSpec(
            num_scalar_prefetch=0,
            grid=(B, n_tiles),
            in_specs=[
                pl.BlockSpec((None, TM, hop), lambda b, i: (b, i, 0)),
                pl.BlockSpec((None, None, ratio, hop), lambda b, i: (b, i, 0, 0)),
                pl.BlockSpec((n_fft, 2 * F), lambda b, i: (0, 0)),    # fused cos|sin
                pl.BlockSpec((n_mels, F), lambda b, i: (0, 0)),       # mel basis^T
            ],
            out_specs=pl.BlockSpec((None, n_mels, TM), lambda b, i: (b, 0, i)),
        ),
        compiler_params=pltpu.CompilerParams(
            dimension_semantics=("parallel", "parallel")),
        cost_estimate=pl.CostEstimate(
            flops=flops,
            transcendentals=transcendentals,
            bytes_accessed=bytes_accessed,
        ),
    )(chunks, halo, dft, fb_t)

    if out_frames != n_frames:
        out = out[:, :, :n_frames]
    # Output layout already matches PyTorch/torchaudio: (B, n_mels, n_frames).
    # TODO(synk): reflect pad / chunk reshape / tiny halo gather stay as
    # plain-JAX glue around the fused kernel.
    return out


if __name__ == "__main__":
    cfg = MelSpectrogramConfig()
    key = jax.random.PRNGKey(0)
    B, T = 2, 2048  # small waveform batch
    audio = jax.random.normal(key, (B, T), dtype=jnp.float32)

    log_mel = mel_spectrogram(audio, cfg)
    log_mel = jax.block_until_ready(log_mel)

    expected_frames = 1 + T // cfg.hop_length
    assert log_mel.shape == (B, cfg.n_mels, expected_frames), log_mel.shape
    assert bool(jnp.all(jnp.isfinite(log_mel)))
    print("KERNEL_OK")
</pallas_src>

<mosaic_0001>
module attributes {stable_mosaic.version = 11 : i64} {
  func.func @mel_kernel(%arg0: i32, %arg1: i32, %arg2: memref<1x40x64xf32, #tpu.memory_space<vmem>>, %arg3: memref<1x1x4x64xf32, #tpu.memory_space<vmem>>, %arg4: memref<256x256xbf16, #tpu.memory_space<vmem>>, %arg5: memref<32x128xbf16, #tpu.memory_space<vmem>>, %arg6: memref<1x32x40xf32, #tpu.memory_space<vmem>>) attributes {dimension_semantics = [#tpu.dimension_semantics<parallel>, #tpu.dimension_semantics<parallel>], iteration_bounds = array<i64: 2, 1>, scalar_prefetch = 0 : i64, scratch_operands = 0 : i64, tpu.core_type = #tpu.core_type<tc>, window_params = [{transform_indices = @transform_0, window_bounds = array<i64: 1, 40, 64>}, {transform_indices = @transform_1, window_bounds = array<i64: 1, 1, 4, 64>}, {pipeline_mode = #tpu.pipeline_mode<synchronous>, transform_indices = @transform_2, window_bounds = array<i64: 256, 256>}, {pipeline_mode = #tpu.pipeline_mode<synchronous>, transform_indices = @transform_3, window_bounds = array<i64: 32, 128>}, {transform_indices = @transform_4, window_bounds = array<i64: 1, 32, 40>}]} {
    %c0 = arith.constant 0 : index
    %c0_0 = arith.constant 0 : index
    %c0_1 = arith.constant 0 : index
    %0 = vector.load %arg2[%c0, %c0_0, %c0_1] : memref<1x40x64xf32, #tpu.memory_space<vmem>>, vector<1x40x64xf32>
    %1 = vector.shape_cast %0 : vector<1x40x64xf32> to vector<40x64xf32>
    %c0_2 = arith.constant 0 : index
    %c0_3 = arith.constant 0 : index
    %c0_4 = arith.constant 0 : index
    %c0_5 = arith.constant 0 : index
    %2 = vector.load %arg3[%c0_2, %c0_3, %c0_4, %c0_5] : memref<1x1x4x64xf32, #tpu.memory_space<vmem>>, vector<1x1x4x64xf32>
    %3 = vector.shape_cast %2 : vector<1x1x4x64xf32> to vector<4x64xf32>
    %4 = tpu.concatenate %1, %3 in 0 : vector<40x64xf32>, vector<4x64xf32> -> vector<44x64xf32>
    %5 = vector.extract_strided_slice %4 {offsets = [0, 0], sizes = [40, 64], strides = [1, 1]} : vector<44x64xf32> to vector<40x64xf32>
    %6 = vector.extract_strided_slice %4 {offsets = [1, 0], sizes = [40, 64], strides = [1, 1]} : vector<44x64xf32> to vector<40x64xf32>
    %7 = vector.extract_strided_slice %4 {offsets = [2, 0], sizes = [40, 64], strides = [1, 1]} : vector<44x64xf32> to vector<40x64xf32>
    %8 = vector.extract_strided_slice %4 {offsets = [3, 0], sizes = [40, 64], strides = [1, 1]} : vector<44x64xf32> to vector<40x64xf32>
    %9 = tpu.concatenate %5, %6, %7, %8 in 1 : vector<40x64xf32>, vector<40x64xf32>, vector<40x64xf32>, vector<40x64xf32> -> vector<40x256xf32>
    %10 = arith.truncf %9 : vector<40x256xf32> to vector<40x256xbf16>
    %c0_6 = arith.constant 0 : index
    %c0_7 = arith.constant 0 : index
    %11 = vector.load %arg4[%c0_6, %c0_7] : memref<256x256xbf16, #tpu.memory_space<vmem>>, vector<256x256xbf16>
    %cst = arith.constant dense<0.000000e+00> : vector<40x256xf32>
    %12 = tpu.matmul %10, %11, %cst {dimension_numbers = #tpu.dot_dimension_numbers<[1], [0], [0], [1], [0, 0, 1, 1], [], []>} : vector<40x256xbf16>, vector<256x256xbf16>, vector<40x256xf32> -> vector<40x256xf32>
    %13 = vector.extract_strided_slice %12 {offsets = [0, 0], sizes = [40, 128], strides = [1, 1]} : vector<40x256xf32> to vector<40x128xf32>
    %14 = vector.extract_strided_slice %12 {offsets = [0, 128], sizes = [40, 128], strides = [1, 1]} : vector<40x256xf32> to vector<40x128xf32>
    %15 = arith.mulf %13, %13 : vector<40x128xf32>
    %16 = arith.mulf %14, %14 : vector<40x128xf32>
    %17 = arith.addf %15, %16 : vector<40x128xf32>
    %18 = tpu.transpose %17, [1, 0] : vector<40x128xf32> -> vector<128x40xf32>
    %19 = math.sqrt %18 : vector<128x40xf32>
    %c0_8 = arith.constant 0 : index
    %c0_9 = arith.constant 0 : index
    %20 = vector.load %arg5[%c0_8, %c0_9] : memref<32x128xbf16, #tpu.memory_space<vmem>>, vector<32x128xbf16>
    %21 = arith.truncf %19 : vector<128x40xf32> to vector<128x40xbf16>
    %cst_10 = arith.constant dense<0.000000e+00> : vector<32x40xf32>
    %22 = tpu.matmul %20, %21, %cst_10 {dimension_numbers = #tpu.dot_dimension_numbers<[1], [0], [0], [1], [0, 0, 1, 1], [], []>} : vector<32x128xbf16>, vector<128x40xbf16>, vector<32x40xf32> -> vector<32x40xf32>
    %cst_11 = arith.constant 9.99999974E-6 : f32
    %23 = vector.broadcast %cst_11 : f32 to vector<32x40xf32>
    %24 = arith.maximumf %22, %23 : vector<32x40xf32>
    %25 = math.log %24 : vector<32x40xf32>
    %c0_12 = arith.constant 0 : index
    %c0_13 = arith.constant 0 : index
    %c0_14 = arith.constant 0 : index
    %26 = vector.load %arg6[%c0_12, %c0_13, %c0_14] : memref<1x32x40xf32, #tpu.memory_space<vmem>>, vector<1x32x40xf32>
    %27 = vector.shape_cast %26 : vector<1x32x40xf32> to vector<32x40xf32>
    %28 = vector.shape_cast %25 : vector<32x40xf32> to vector<1x32x40xf32>
    tpu.vector_store %arg6[%c0_12, %c0_13, %c0_14], %28 {strides = array<i32>} : memref<1x32x40xf32, #tpu.memory_space<vmem>>, vector<1x32x40xf32>,
    return
  }
  func.func @transform_0(%arg0: i32, %arg1: i32) -> (i32, i32, i32) {
    %c0_i32 = arith.constant 0 : i32
    %c0_i32_0 = arith.constant 0 : i32
    return %arg0, %arg1, %c0_i32 : i32, i32, i32
  }
  func.func @transform_1(%arg0: i32, %arg1: i32) -> (i32, i32, i32, i32) {
    %c0_i32 = arith.constant 0 : i32
    %c0_i32_0 = arith.constant 0 : i32
    %c0_i32_1 = arith.constant 0 : i32
    return %arg0, %arg1, %c0_i32, %c0_i32_0 : i32, i32, i32, i32
  }
  func.func @transform_2(%arg0: i32, %arg1: i32) -> (i32, i32) {
    %c0_i32 = arith.constant 0 : i32
    %c0_i32_0 = arith.constant 0 : i32
    %c0_i32_1 = arith.constant 0 : i32
    return %c0_i32, %c0_i32_0 : i32, i32
  }
  func.func @transform_3(%arg0: i32, %arg1: i32) -> (i32, i32) {
    %c0_i32 = arith.constant 0 : i32
    %c0_i32_0 = arith.constant 0 : i32
    %c0_i32_1 = arith.constant 0 : i32
    return %c0_i32, %c0_i32_0 : i32, i32
  }
  func.func @transform_4(%arg0: i32, %arg1: i32) -> (i32, i32, i32) {
    %c0_i32 = arith.constant 0 : i32
    %c0_i32_0 = arith.constant 0 : i32
    return %arg0, %c0_i32, %arg1 : i32, i32, i32
  }
}

</mosaic_0001>

<llo_original>
// kernel: mel_spectrogram.1
$region0: #{mel_spectrogram.1}
  #allocation0 [shape = 'u32[]', space=smem, size = 0x4, offset = 0x4, fixed_abs, tag = 'smem constant byte address 0x4 - core index']
  #allocation1 [shape = 'u32[72,128]{1,0:T(1,128)}', space=vmem, size = 0x9000, scoped, tag = 'internal scratch']
  %s0 = inlined_call_operand.vmem [shape: f32[2,44,64], index: 0, kind: input, shape index: {}]
  %s1 = inlined_call_operand.vmem [shape: f32[2,1,4,64], index: 1, kind: input, shape index: {}]
  %s2 = inlined_call_operand.vmem [shape: bf16[256,256], index: 2, kind: input, shape index: {}]
  %s3 = inlined_call_operand.vmem [shape: bf16[32,128], index: 3, kind: input, shape index: {}]
  %s4 = inlined_call_operand.hbm [shape: f32[2,32,40], index: 4, kind: output, shape index: {}]
  %s5 = sld [smem:[#allocation0]]
  $region49: #{mel_spectrogram.1} parent=0
    _
  %s7 = ssub.s32 1, %s5
  %s8 = scalar_select 0, %s7, %s5
  $region1: #{mel_spectrogram.1} parent=0
    #allocation2 [shape = 'u8[32768]{0}', space=vmem, size = 0x8000, scoped, tag = 'output window, operand 0']
    #allocation3 [shape = 's32[2]{0}', space=sflag, size = 0x8, scoped, tag = 'scoped memory for mel_spectrogram.1']
    %9 = vsyncpa [#allocation3], 0
    %s10 = scalar_lea.sflag [#allocation3], 1
    %11 = vsyncpa %s10, 0
    loop: start=0, step=1, limit=4
    $region2: #{mel_spectrogram.1} parent=1 // loop_pre_header
      _
    $region3: #{mel_spectrogram.1} parent=1 // loop_header
      %s13 = sphi 0, %s17
      %p14 = scmp.ge.s32.totalorder %s13, 4
      %s20 = sphi 0, %s32
      %s21 = sphi 0, %s28
      %s22 = sphi 0, %s20
      %s23 = sphi 0, %s21
      %s24 = sphi 0, %s22
      %s25 = sphi 0, %s23
      %s37 = sphi 0, %s39
      %s40 = sphi 0, %s37
      %s41 = sphi 0, %s40
      %s57 = sphi 0, %s41
      %s65 = sphi 0, %s67
      %s68 = sphi 0, %s65
      %s69 = sphi 0, %s68
      %s85 = sphi 0, %s69
      %s89 = sphi 0, %s89
      %s91 = sphi 0, %s89
      %s92 = sphi 0, %s91
      %s106 = sphi 0, %s92
      %s110 = sphi 0, %s110
      %s112 = sphi 0, %s110
      %s113 = sphi 0, %s112
      %s127 = sphi 0, %s113
      %s135 = sphi 0, %s137
      %s138 = sphi 0, %s135
      %s139 = sphi 0, %s138
      %s155 = sphi 0, %s139
    $region4: #{mel_spectrogram.1} parent=1 // loop_header_branch
      %16 = sbr.rel (%p14) target = $region8
    $region5: #{mel_spectrogram.1} parent=1 // loop_body
      %s18 = ssub.s32 %s13, 1
      %s19 = ssub.s32 %s13, 2
      %s26 = sadd.s32 1, %s21
      %p27 = scmp.ge.s32.totalorder %s26, 1
      %s28 = scalar_select %p27, 0, %s26
      %s29 = sadd.s32 1, %s20
      %s30 = scalar_select %p27, %s29, %s20
      %p31 = scmp.ge.s32.totalorder %s30, 2
      %s32 = scalar_select %p31, 0, %s30
      %s33 = ssub.s32 %s20, %s32
      %s34 = ssub.s32 %s21, %s28
      %s35 = sor.u32 %s33, %s34
      %p36 = scmp.eq.s32.totalorder %s35, 0
      %s38 = sadd.s32 %s37, 1
      %s39 = scalar_select %p36, %s37, %s38
      %p42 = pneg %p36
      %p43 = scmp.eq.s32.totalorder %s13, 1
      %p44 = por %p42, %p43
      %p45 = scmp.ne.s32.totalorder %s37, %s40
      %p46 = scmp.eq.s32.totalorder %s13, 0
      %p47 = por %p45, %p46
      %p48 = scmp.ne.s32.totalorder %s37, %s40
      %p49 = scmp.eq.s32.totalorder %s18, 1
      %p50 = por %p48, %p49
      %p51 = scmp.ne.s32.totalorder %s40, %s41
      %p52 = scmp.eq.s32.totalorder %s18, 0
      %p53 = por %p51, %p52
      %p54 = scmp.ne.s32.totalorder %s40, %s41
      %p55 = scmp.eq.s32.totalorder %s19, 1
      %p56 = por %p54, %p55
      %p58 = scmp.ne.s32.totalorder %s41, %s57
      %p59 = scmp.eq.s32.totalorder %s19, 0
      %p60 = por %p58, %p59
      %s61 = ssub.s32 %s20, %s32
      %s62 = ssub.s32 %s21, %s28
      %s63 = sor.u32 %s61, %s62
      %p64 = scmp.eq.s32.totalorder %s63, 0
      %s66 = sadd.s32 %s65, 1
      %s67 = scalar_select %p64, %s65, %s66
      %p70 = pneg %p64
      %p71 = scmp.eq.s32.totalorder %s13, 1
      %p72 = por %p70, %p71
      %p73 = scmp.ne.s32.totalorder %s65, %s68
      %p74 = scmp.eq.s32.totalorder %s13, 0
      %p75 = por %p73, %p74
      %p76 = scmp.ne.s32.totalorder %s65, %s68
      %p77 = scmp.eq.s32.totalorder %s18, 1
      %p78 = por %p76, %p77
      %p79 = scmp.ne.s32.totalorder %s68, %s69
      %p80 = scmp.eq.s32.totalorder %s18, 0
      %p81 = por %p79, %p80
      %p82 = scmp.ne.s32.totalorder %s68, %s69
      %p83 = scmp.eq.s32.totalorder %s19, 1
      %p84 = por %p82, %p83
      %p86 = scmp.ne.s32.totalorder %s69, %s85
      %p87 = scmp.eq.s32.totalorder %s19, 0
      %p88 = por %p86, %p87
      %s90 = sadd.s32 %s89, 1
      %p93 = scmp.eq.s32.totalorder %s13, 1
      %p94 = scmp.ne.s32.totalorder %s89, %s91
      %p95 = scmp.eq.s32.totalorder %s13, 0
      %p96 = por %p94, %p95
      %p97 = scmp.ne.s32.totalorder %s89, %s91
      %p98 = scmp.eq.s32.totalorder %s18, 1
      %p99 = por %p97, %p98
      %p100 = scmp.ne.s32.totalorder %s91, %s92
      %p101 = scmp.eq.s32.totalorder %s18, 0
      %p102 = por %p100, %p101
      %p103 = scmp.ne.s32.totalorder %s91, %s92
      %p104 = scmp.eq.s32.totalorder %s19, 1
      %p105 = por %p103, %p104
      %p107 = scmp.ne.s32.totalorder %s92, %s106
      %p108 = scmp.eq.s32.totalorder %s19, 0
      %p109 = por %p107, %p108
      %s111 = sadd.s32 %s110, 1
      %p114 = scmp.eq.s32.totalorder %s13, 1
      %p115 = scmp.ne.s32.totalorder %s110, %s112
      %p116 = scmp.eq.s32.totalorder %s13, 0
      %p117 = por %p115, %p116
      %p118 = scmp.ne.s32.totalorder %s110, %s112
      %p119 = scmp.eq.s32.totalorder %s18, 1
      %p120 = por %p118, %p119
      %p121 = scmp.ne.s32.totalorder %s112, %s113
      %p122 = scmp.eq.s32.totalorder %s18, 0
      %p123 = por %p121, %p122
      %p124 = scmp.ne.s32.totalorder %s112, %s113
      %p125 = scmp.eq.s32.totalorder %s19, 1
      %p126 = por %p124, %p125
      %p128 = scmp.ne.s32.totalorder %s113, %s127
      %p129 = scmp.eq.s32.totalorder %s19, 0
      %p130 = por %p128, %p129
      %s131 = ssub.s32 %s20, %s32
      %s132 = ssub.s32 %s21, %s28
      %s133 = sor.u32 %s131, %s132
      %p134 = scmp.eq.s32.totalorder %s133, 0
      %s136 = sadd.s32 %s135, 1
      %s137 = scalar_select %p134, %s135, %s136
      %p140 = pneg %p134
      %p141 = scmp.eq.s32.totalorder %s13, 1
      %p142 = por %p140, %p141
      %p143 = scmp.ne.s32.totalorder %s135, %s138
      %p144 = scmp.eq.s32.totalorder %s13, 0
      %p145 = por %p143, %p144
      %p146 = scmp.ne.s32.totalorder %s135, %s138
      %p147 = scmp.eq.s32.totalorder %s18, 1
      %p148 = por %p146, %p147
      %p149 = scmp.ne.s32.totalorder %s138, %s139
      %p150 = scmp.eq.s32.totalorder %s18, 0
      %p151 = por %p149, %p150
      %p152 = scmp.ne.s32.totalorder %s138, %s139
      %p153 = scmp.eq.s32.totalorder %s19, 1
      %p154 = por %p152, %p153
      %p156 = scmp.ne.s32.totalorder %s139, %s155
      %p157 = scmp.eq.s32.totalorder %s19, 0
      %p158 = por %p156, %p157
      %p159 = scmp.le.s32.totalorder 1, %s13
      %p160 = scmp.lt.s32.totalorder %s13, 3
      %p161 = pnand %p159, %p160
      %p162 = pneg %p161
      // Predicated region
      $region9: #{mel_spectrogram.1} parent=5 // pred_check
        _
      $region10: #{mel_spectrogram.1} parent=5 // pred_check_branch
        %164 = sbr.rel (%p161) target = $region12
      $region11: #{mel_spectrogram.1} parent=5 // pred_region
        %s165 = ssub.s32 %s13, 1
        // Predicated region
        $region13: #{mel_spectrogram.1} parent=11 // pred_check
          %p166 = pneg %p102
        $region14: #{mel_spectrogram.1} parent=11 // pred_check_branch
          %168 = sbr.rel (%p166) target = $region16
        $region15: #{mel_spectrogram.1} parent=11 // pred_region
          _
        $region16: #{mel_spectrogram.1} parent=11 // pred_fallthru
          _
        // Predicated region
        $region17: #{mel_spectrogram.1} parent=11 // pred_check
          %p169 = pneg %p123
        $region18: #{mel_spectrogram.1} parent=11 // pred_check_branch
          %171 = sbr.rel (%p169) target = $region20
        $region19: #{mel_spectrogram.1} parent=11 // pred_region
          _
        $region20: #{mel_spectrogram.1} parent=11 // pred_fallthru
          _
      $region12: #{mel_spectrogram.1} parent=5 // pred_fallthru
        _
      %p172 = scmp.lt.s32.totalorder %s13, 2
      // Predicated region
      $region21: #{mel_spectrogram.1} parent=5 // pred_check
        %p173 = pneg %p172
      $region22: #{mel_spectrogram.1} parent=5 // pred_check_branch
        %175 = sbr.rel (%p173) target = $region24
      $region23: #{mel_spectrogram.1} parent=5 // pred_region
        // Predicated region
        $region25: #{mel_spectrogram.1} parent=23 // pred_check
          %p176 = pneg %p47
        $region26: #{mel_spectrogram.1} parent=23 // pred_check_branch
          %178 = sbr.rel (%p176) target = $region28
        $region27: #{mel_spectrogram.1} parent=23 // pred_region
          %s179 = smul.u32 5, %s21
          %s180 = ssub.s32 6, %s179
          %p181 = scmp.lt.s32.totalorder %s180, 5
          %s182 = scalar_select %p181, %s180, 5
          %s183 = smul.u32 8, %s182
          %p184 = scmp.lt.s32.totalorder %s20, 1
          %s185 = scalar_select %p184, %s20, 1
          %p186 = scmp.lt.s32.totalorder %s179, 5
          %s187 = scalar_select %p186, %s179, 5
          %s188 = smul.addr %s185, 6
          %s189 = sadd.s32 %s187, %s188
          %s190 = smul.addr %s189, 8
          %s191 = scalar_lea.vmem %s0, %s190
          %s192 = smul.u32 5, %s21
          %s193 = ssub.s32 6, %s192
          %p194 = scmp.lt.s32.totalorder %s193, 5
          %s195 = scalar_select %p194, %s193, 5
          %s196 = smul.u32 8, %s195
        $region28: #{mel_spectrogram.1} parent=23 // pred_fallthru
          _
        // Predicated region
        $region29: #{mel_spectrogram.1} parent=23 // pred_check
          %p197 = pneg %p75
        $region30: #{mel_spectrogram.1} parent=23 // pred_check_branch
          %199 = sbr.rel (%p197) target = $region32
        $region31: #{mel_spectrogram.1} parent=23 // pred_region
          %p200 = scmp.lt.s32.totalorder %s20, 1
          %s201 = scalar_select %p200, %s20, 1
          %p202 = scmp.lt.s32.totalorder %s21, 0
          %s203 = scalar_select %p202, %s21, 0
          %s204 = sadd.s32 %s203, %s201
          %s205 = smul.addr %s204, 4
          %s206 = scalar_lea.vmem %s1, %s205
        $region32: #{mel_spectrogram.1} parent=23 // pred_fallthru
          _
      $region24: #{mel_spectrogram.1} parent=5 // pred_fallthru
        _
      %p207 = scmp.le.s32.totalorder 1, %s13
      %p208 = scmp.lt.s32.totalorder %s13, 3
      %p209 = pnand %p207, %p208
      %p210 = pneg %p209
      // Predicated region
      $region33: #{mel_spectrogram.1} parent=5 // pred_check
        _
      $region34: #{mel_spectrogram.1} parent=5 // pred_check_branch
        %212 = sbr.rel (%p209) target = $region36
      $region35: #{mel_spectrogram.1} parent=5 // pred_region
        %s213 = ssub.s32 %s13, 1
        %s214 = smul.u32 5, %s23
        %s215 = ssub.s32 6, %s214
        %p216 = scmp.lt.s32.totalorder %s215, 5
        %s217 = scalar_select %p216, %s215, 5
        %s218 = smul.u32 8, %s217
        %p219 = scmp.lt.s32.totalorder %s22, 1
        %s220 = scalar_select %p219, %s22, 1
        %p221 = scmp.lt.s32.totalorder %s214, 5
        %s222 = scalar_select %p221, %s214, 5
        %s223 = smul.addr %s220, 6
        %s224 = sadd.s32 %s222, %s223
        %s225 = smul.addr %s224, 8
        %s226 = scalar_lea.vmem %s0, %s225
        %p227 = pneg %p53
        %p228 = pneg %p50
        %p229 = scmp.lt.s32.totalorder %s22, 1
        %s230 = scalar_select %p229, %s22, 1
        %p231 = scmp.lt.s32.totalorder %s23, 0
        %s232 = scalar_select %p231, %s23, 0
        %s233 = sadd.s32 %s232, %s230
        %s234 = smul.addr %s233, 4
        %s235 = scalar_lea.vmem %s1, %s234
        %p236 = pneg %p81
        %p237 = pneg %p78
        %p238 = pneg %p102
        %p239 = pneg %p99
        %p240 = pneg %p123
        %p241 = pneg %p120
        %p242 = pneg %p151
        %p243 = pneg %p148
        %s244 = sand.u32 %s138, 1
        %s245 = scalar_lea.sflag [#allocation3], %s244
        %s246 = sand.u32 %s138, 1
        %s247 = smul.addr %s246, 32
        %s248 = scalar_lea.vmem [#allocation2], %s247
        %s249 = smul.u32 5, %s23
        %s250 = ssub.s32 6, %s249
        %p251 = scmp.lt.s32.totalorder %s250, 5
        %s252 = scalar_select %p251, %s250, 5
        %s253 = smul.u32 8, %s252
        %p254 = scmp.lt.s32.totalorder %s22, 1
        %s255 = scalar_select %p254, %s22, 1
        %p256 = scmp.lt.s32.totalorder %s249, 5
        %s257 = scalar_select %p256, %s249, 5
        %s258 = smul.addr %s255, 6
        %s259 = sadd.s32 %s257, %s258
        %s260 = smul.addr %s259, 8
        %s261 = scalar_lea.vmem %s0, %s260
        %s262 = smul.u32 5, %s23
        %s263 = ssub.s32 6, %s262
        %p264 = scmp.lt.s32.totalorder %s263, 5
        %s265 = scalar_select %p264, %s263, 5
        %s266 = smul.u32 8, %s265
        %p267 = scmp.lt.s32.totalorder %s22, 1
        %s268 = scalar_select %p267, %s22, 1
        %p269 = scmp.lt.s32.totalorder %s23, 0
        %s270 = scalar_select %p269, %s23, 0
        %s271 = sadd.s32 %s270, %s268
        %s272 = smul.addr %s271, 4
        %s273 = scalar_lea.vmem %s1, %s272
        %v274 = vld [vmem:[%s261] sm:$0xff]
        %v275 = vld [vmem:[%s261 + $0x8] sm:$0xff]
        %v276 = vld [vmem:[%s261 + $0x10] sm:$0xff]
        %v277 = vld [vmem:[%s261 + $0x18] sm:$0xff]
        %v278 = vld [vmem:[%s261 + $0x20] sm:$0xff]
        %v279 = vld [vmem:[%s273] sm:$0xf]
        %vm286 = vcmask 1046528
        %v287 = vrot.slane %v274, 1
        %v288 = vrot.slane %v275, 1
        %v289 = vsel %vm286, %v287, %v288
        %v290 = vrot.slane %v276, 1
        %v291 = vsel %vm286, %v288, %v290
        %v292 = vrot.slane %v277, 1
        %v293 = vsel %vm286, %v290, %v292
        %v294 = vrot.slane %v278, 1
        %v295 = vsel %vm286, %v292, %v294
        %v296 = vrot.slane %v279, 1
        %v297 = vsel %vm286, %v294, %v296
        %298 = vrot.lane.b32.xlu0 %v289, 64
        %v299 = vpop.permute.xlu0 %298
        %300 = vrot.lane.b32.xlu0 %v291, 64
        %v301 = vpop.permute.xlu0 %300
        %302 = vrot.lane.b32.xlu0 %v293, 64
        %v303 = vpop.permute.xlu0 %302
        %304 = vrot.lane.b32.xlu0 %v295, 64
        %v305 = vpop.permute.xlu0 %304
        %306 = vrot.lane.b32.xlu0 %v297, 64
        %v307 = vpop.permute.xlu0 %306
        %vm313 = vcmask 1045504
        %v314 = vrot.slane %v274, 2
        %v315 = vrot.slane %v275, 2
        %v316 = vsel %vm313, %v314, %v315
        %v317 = vrot.slane %v276, 2
        %v318 = vsel %vm313, %v315, %v317
        %v319 = vrot.slane %v277, 2
        %v320 = vsel %vm313, %v317, %v319
        %v321 = vrot.slane %v278, 2
        %v322 = vsel %vm313, %v319, %v321
        %v323 = vrot.slane %v279, 2
        %v324 = vsel %vm313, %v321, %v323
        %vm330 = vcmask 1044480
        %v331 = vrot.slane %v274, 3
        %v332 = vrot.slane %v275, 3
        %v333 = vsel %vm330, %v331, %v332
        %v334 = vrot.slane %v276, 3
        %v335 = vsel %vm330, %v332, %v334
        %v336 = vrot.slane %v277, 3
        %v337 = vsel %vm330, %v334, %v336
        %v338 = vrot.slane %v278, 3
        %v339 = vsel %vm330, %v336, %v338
        %v340 = vrot.slane %v279, 3
        %v341 = vsel %vm330, %v338, %v340
        %342 = vrot.lane.b32.xlu0 %v333, 64
        %v343 = vpop.permute.xlu0 %342
        %344 = vrot.lane.b32.xlu0 %v335, 64
        %v345 = vpop.permute.xlu0 %344
        %346 = vrot.lane.b32.xlu0 %v337, 64
        %v347 = vpop.permute.xlu0 %346
        %348 = vrot.lane.b32.xlu0 %v339, 64
        %v349 = vpop.permute.xlu0 %348
        %350 = vrot.lane.b32.xlu0 %v341, 64
        %v351 = vpop.permute.xlu0 %350
        %vm357 = vcmask 523264
        %v358 = vsel %vm357, %v274, %v299
        %v359 = vsel %vm357, %v275, %v301
        %v360 = vsel %vm357, %v276, %v303
        %v361 = vsel %vm357, %v277, %v305
        %v362 = vsel %vm357, %v278, %v307
        %v363 = vsel %vm357, %v316, %v343
        %v364 = vsel %vm357, %v318, %v345
        %v365 = vsel %vm357, %v320, %v347
        %v366 = vsel %vm357, %v322, %v349
        %v367 = vsel %vm357, %v324, %v351
        %v368 = vpack.c.bf16 %v359, %v358
        %v369 = vpack.c.bf16 %v364, %v363
        %v370 = vpack.c.bf16 %v361, %v360
        %v371 = vpack.c.bf16 %v366, %v365
        %v372 = vpack.c.bf16 %v362, %v362
        %v373 = vpack.c.bf16 %v367, %v367
        %v374 = vld [vmem:[%s2] sm:$0xff]
        %v375 = vld [vmem:[%s2 + $0x8] sm:$0xff]
        %v376 = vld [vmem:[%s2 + $0x10] sm:$0xff]
        %v377 = vld [vmem:[%s2 + $0x18] sm:$0xff]
        %v378 = vld [vmem:[%s2 + $0x20] sm:$0xff]
        %v379 = vld [vmem:[%s2 + $0x28] sm:$0xff]
        %v380 = vld [vmem:[%s2 + $0x30] sm:$0xff]
        %v381 = vld [vmem:[%s2 + $0x38] sm:$0xff]
        %v382 = vld [vmem:[%s2 + $0x40] sm:$0xff]
        %v383 = vld [vmem:[%s2 + $0x48] sm:$0xff]
        %v384 = vld [vmem:[%s2 + $0x50] sm:$0xff]
        %v385 = vld [vmem:[%s2 + $0x58] sm:$0xff]
        %v386 = vld [vmem:[%s2 + $0x60] sm:$0xff]
        %v387 = vld [vmem:[%s2 + $0x68] sm:$0xff]
        %v388 = vld [vmem:[%s2 + $0x70] sm:$0xff]
        %v389 = vld [vmem:[%s2 + $0x78] sm:$0xff]
        %v390 = vld [vmem:[%s2 + $0x80] sm:$0xff]
        %v391 = vld [vmem:[%s2 + $0x88] sm:$0xff]
        %v392 = vld [vmem:[%s2 + $0x90] sm:$0xff]
        %v393 = vld [vmem:[%s2 + $0x98] sm:$0xff]
        %v394 = vld [vmem:[%s2 + $0xa0] sm:$0xff]
        %v395 = vld [vmem:[%s2 + $0xa8] sm:$0xff]
        %v396 = vld [vmem:[%s2 + $0xb0] sm:$0xff]
        %v397 = vld [vmem:[%s2 + $0xb8] sm:$0xff]
        %v398 = vld [vmem:[%s2 + $0xc0] sm:$0xff]
        %v399 = vld [vmem:[%s2 + $0xc8] sm:$0xff]
        %v400 = vld [vmem:[%s2 + $0xd0] sm:$0xff]
        %v401 = vld [vmem:[%s2 + $0xd8] sm:$0xff]
        %v402 = vld [vmem:[%s2 + $0xe0] sm:$0xff]
        %v403 = vld [vmem:[%s2 + $0xe8] sm:$0xff]
        %v404 = vld [vmem:[%s2 + $0xf0] sm:$0xff]
        %v405 = vld [vmem:[%s2 + $0xf8] sm:$0xff]
        %v438 = vunpack.c.l.b16 %v374
        %v439 = vunpack.c.h.b16 %v374
        %v440 = vunpack.c.l.b16 %v375
        %v441 = vunpack.c.h.b16 %v375
        %v442 = vunpack.c.l.b16 %v376
        %v443 = vunpack.c.h.b16 %v376
        %v444 = vunpack.c.l.b16 %v377
        %v445 = vunpack.c.h.b16 %v377
        %v446 = vunpack.c.l.b16 %v378
        %v447 = vunpack.c.h.b16 %v378
        %v448 = vunpack.c.l.b16 %v379
        %v449 = vunpack.c.h.b16 %v379
        %v450 = vunpack.c.l.b16 %v380
        %v451 = vunpack.c.h.b16 %v380
        %v452 = vunpack.c.l.b16 %v381
        %v453 = vunpack.c.h.b16 %v381
        %v454 = vunpack.c.l.b16 %v382
        %v455 = vunpack.c.h.b16 %v382
        %v456 = vunpack.c.l.b16 %v383
        %v457 = vunpack.c.h.b16 %v383
        %v458 = vunpack.c.l.b16 %v384
        %v459 = vunpack.c.h.b16 %v384
        %v460 = vunpack.c.l.b16 %v385
        %v461 = vunpack.c.h.b16 %v385
        %v462 = vunpack.c.l.b16 %v386
        %v463 = vunpack.c.h.b16 %v386
        %v464 = vunpack.c.l.b16 %v387
        %v465 = vunpack.c.h.b16 %v387
        %v466 = vunpack.c.l.b16 %v388
        %v467 = vunpack.c.h.b16 %v388
        %v468 = vunpack.c.l.b16 %v389
        %v469 = vunpack.c.h.b16 %v389
        %v470 = vunpack.c.l.b16 %v390
        %v471 = vunpack.c.h.b16 %v390
        %v472 = vunpack.c.l.b16 %v391
        %v473 = vunpack.c.h.b16 %v391
        %v474 = vunpack.c.l.b16 %v392
        %v475 = vunpack.c.h.b16 %v392
        %v476 = vunpack.c.l.b16 %v393
        %v477 = vunpack.c.h.b16 %v393
        %v478 = vunpack.c.l.b16 %v394
        %v479 = vunpack.c.h.b16 %v394
        %v480 = vunpack.c.l.b16 %v395
        %v481 = vunpack.c.h.b16 %v395
        %v482 = vunpack.c.l.b16 %v396
        %v483 = vunpack.c.h.b16 %v396
        %v484 = vunpack.c.l.b16 %v397
        %v485 = vunpack.c.h.b16 %v397
        %v486 = vunpack.c.l.b16 %v398
        %v487 = vunpack.c.h.b16 %v398
        %v488 = vunpack.c.l.b16 %v399
        %v489 = vunpack.c.h.b16 %v399
        %v490 = vunpack.c.l.b16 %v400
        %v491 = vunpack.c.h.b16 %v400
        %v492 = vunpack.c.l.b16 %v401
        %v493 = vunpack.c.h.b16 %v401
        %v494 = vunpack.c.l.b16 %v402
        %v495 = vunpack.c.h.b16 %v402
        %v496 = vunpack.c.l.b16 %v403
        %v497 = vunpack.c.h.b16 %v403
        %v498 = vunpack.c.l.b16 %v404
        %v499 = vunpack.c.h.b16 %v404
        %v500 = vunpack.c.l.b16 %v405
        %v501 = vunpack.c.h.b16 %v405
        %v502 = vpack.c.b16 %v440, %v438
        %v503 = vpack.c.b16 %v441, %v439
        %v504 = vpack.c.b16 %v444, %v442
        %v505 = vpack.c.b16 %v445, %v443
        %v506 = vpack.c.b16 %v448, %v446
        %v507 = vpack.c.b16 %v449, %v447
        %v508 = vpack.c.b16 %v452, %v450
        %v509 = vpack.c.b16 %v453, %v451
        %v510 = vpack.c.b16 %v456, %v454
        %v511 = vpack.c.b16 %v457, %v455
        %v512 = vpack.c.b16 %v460, %v458
        %v513 = vpack.c.b16 %v461, %v459
        %v514 = vpack.c.b16 %v464, %v462
        %v515 = vpack.c.b16 %v465, %v463
        %v516 = vpack.c.b16 %v468, %v466
        %v517 = vpack.c.b16 %v469, %v467
        %v518 = vpack.c.b16 %v472, %v470
        %v519 = vpack.c.b16 %v473, %v471
        %v520 = vpack.c.b16 %v476, %v474
        %v521 = vpack.c.b16 %v477, %v475
        %v522 = vpack.c.b16 %v480, %v478
        %v523 = vpack.c.b16 %v481, %v479
        %v524 = vpack.c.b16 %v484, %v482
        %v525 = vpack.c.b16 %v485, %v483
        %v526 = vpack.c.b16 %v488, %v486
        %v527 = vpack.c.b16 %v489, %v487
        %v528 = vpack.c.b16 %v492, %v490
        %v529 = vpack.c.b16 %v493, %v491
        %v530 = vpack.c.b16 %v496, %v494
        %v531 = vpack.c.b16 %v497, %v495
        %v532 = vpack.c.b16 %v500, %v498
        %v533 = vpack.c.b16 %v501, %v499
        %566 = vmatpush.bf16.msra.mxu0 %v516
        %567 = vmatpush.bf16.msra.mxu0 %v514
        %568 = vmatpush.bf16.msra.mxu0 %v512
        %569 = vmatpush.bf16.msra.mxu0 %v510
        %570 = vmatpush.bf16.msra.mxu0 %v508
        %571 = vmatpush.bf16.msra.mxu0 %v506
        %572 = vmatpush.bf16.msra.mxu0 %v504
        %573 = vmatpush.bf16.msra.mxu0 %v502
        %574 = vmatmul.bf16.gmra.mxu0 %v368
        %v575 = vpop.f32.mrf.mxu0
        %v576 = vadd.f32 0.0, %v575
        %v577 = vpop.f32.mrf.mxu0
        %v578 = vadd.f32 0.0, %v577
        %579 = vmatmul.bf16.gmra.mxu0 %v370
        %v580 = vpop.f32.mrf.mxu0
        %v581 = vadd.f32 0.0, %v580
        %v582 = vpop.f32.mrf.mxu0
        %v583 = vadd.f32 0.0, %v582
        %584 = vmatmul.bf16.gmra.mxu0 %v372
        %v585 = vpop.f32.mrf.mxu0
        %v586 = vadd.f32 0.0, %v585
        %v587 = vpop.f32.mrf.mxu0
        %588 = vdwg.mxu0
        %589 = vmatpush.bf16.msra.mxu0 %v532
        %590 = vmatpush.bf16.msra.mxu0 %v530
        %591 = vmatpush.bf16.msra.mxu0 %v528
        %592 = vmatpush.bf16.msra.mxu0 %v526
        %593 = vmatpush.bf16.msra.mxu0 %v524
        %594 = vmatpush.bf16.msra.mxu0 %v522
        %595 = vmatpush.bf16.msra.mxu0 %v520
        %596 = vmatpush.bf16.msra.mxu0 %v518
        %597 = vmatmul.bf16.gmra.mxu0 %v369
        %v598 = vpop.f32.mrf.mxu0
        %v599 = vadd.f32 %v576, %v598
        %v600 = vpop.f32.mrf.mxu0
        %v601 = vadd.f32 %v578, %v600
        %602 = vmatmul.bf16.gmra.mxu0 %v371
        %v603 = vpop.f32.mrf.mxu0
        %v604 = vadd.f32 %v581, %v603
        %v605 = vpop.f32.mrf.mxu0
        %v606 = vadd.f32 %v583, %v605
        %607 = vmatmul.bf16.gmra.mxu0 %v373
        %v608 = vpop.f32.mrf.mxu0
        %v609 = vadd.f32 %v586, %v608
        %v610 = vpop.f32.mrf.mxu0
        %611 = vdwg.mxu0
        %612 = vmatpush.bf16.msra.mxu0 %v517
        %613 = vmatpush.bf16.msra.mxu0 %v515
        %614 = vmatpush.bf16.msra.mxu0 %v513
        %615 = vmatpush.bf16.msra.mxu0 %v511
        %616 = vmatpush.bf16.msra.mxu0 %v509
        %617 = vmatpush.bf16.msra.mxu0 %v507
        %618 = vmatpush.bf16.msra.mxu0 %v505
        %619 = vmatpush.bf16.msra.mxu0 %v503
        %620 = vmatmul.bf16.gmra.mxu0 %v368
        %v621 = vpop.f32.mrf.mxu0
        %v622 = vadd.f32 0.0, %v621
        %v623 = vpop.f32.mrf.mxu0
        %v624 = vadd.f32 0.0, %v623
        %625 = vmatmul.bf16.gmra.mxu0 %v370
        %v626 = vpop.f32.mrf.mxu0
        %v627 = vadd.f32 0.0, %v626
        %v628 = vpop.f32.mrf.mxu0
        %v629 = vadd.f32 0.0, %v628
        %630 = vmatmul.bf16.gmra.mxu0 %v372
        %v631 = vpop.f32.mrf.mxu0
        %v632 = vadd.f32 0.0, %v631
        %v633 = vpop.f32.mrf.mxu0
        %634 = vdwg.mxu0
        %635 = vmatpush.bf16.msra.mxu0 %v533
        %636 = vmatpush.bf16.msra.mxu0 %v531
        %637 = vmatpush.bf16.msra.mxu0 %v529
        %638 = vmatpush.bf16.msra.mxu0 %v527
        %639 = vmatpush.bf16.msra.mxu0 %v525
        %640 = vmatpush.bf16.msra.mxu0 %v523
        %641 = vmatpush.bf16.msra.mxu0 %v521
        %642 = vmatpush.bf16.msra.mxu0 %v519
        %643 = vmatmul.bf16.gmra.mxu0 %v369
        %v644 = vpop.f32.mrf.mxu0
        %v645 = vadd.f32 %v622, %v644
        %v646 = vpop.f32.mrf.mxu0
        %v647 = vadd.f32 %v624, %v646
        %648 = vmatmul.bf16.gmra.mxu0 %v371
        %v649 = vpop.f32.mrf.mxu0
        %v650 = vadd.f32 %v627, %v649
        %v651 = vpop.f32.mrf.mxu0
        %v652 = vadd.f32 %v629, %v651
        %653 = vmatmul.bf16.gmra.mxu0 %v373
        %v654 = vpop.f32.mrf.mxu0
        %v655 = vadd.f32 %v632, %v654
        %v656 = vpop.f32.mrf.mxu0
        %657 = vdwg.mxu0
        %v658 = vmul.f32 %v599, %v599
        %v659 = vmul.f32 %v601, %v601
        %v660 = vmul.f32 %v604, %v604
        %v661 = vmul.f32 %v606, %v606
        %v662 = vmul.f32 %v609, %v609
        %v663 = vmul.f32 %v645, %v645
        %v664 = vmul.f32 %v647, %v647
        %v665 = vmul.f32 %v650, %v650
        %v666 = vmul.f32 %v652, %v652
        %v667 = vmul.f32 %v655, %v655
        %v668 = vadd.f32 %v658, %v663
        %v669 = vadd.f32 %v659, %v664
        %v670 = vadd.f32 %v660, %v665
        %v671 = vadd.f32 %v661, %v666
        %v672 = vadd.f32 %v662, %v667
        %673 = vxpose.xlu0.b32.start [1/16] %v668, 128
        %674 = vxpose.xlu0.b32.cont [2/16] %v669, 128
        %675 = vxpose.xlu0.b32.cont [3/16] %v670, 128
        %676 = vxpose.xlu0.b32.cont [4/16] %v671, 128
        %677 = vxpose.xlu0.b32.cont [5/16] %v672, 128
        %678 = vxpose.xlu0.b32.cont [6/16] 0.0, 128
        %679 = vxpose.xlu0.b32.cont [7/16] 0.0, 128
        %680 = vxpose.xlu0.b32.cont [8/16] 0.0, 128
        %681 = vxpose.xlu0.b32.cont [9/16] 0.0, 128
        %682 = vxpose.xlu0.b32.cont [10/16] 0.0, 128
        %683 = vxpose.xlu0.b32.cont [11/16] 0.0, 128
        %684 = vxpose.xlu0.b32.cont [12/16] 0.0, 128
        %685 = vxpose.xlu0.b32.cont [13/16] 0.0, 128
        %686 = vxpose.xlu0.b32.cont [14/16] 0.0, 128
        %687 = vxpose.xlu0.b32.cont [15/16] 0.0, 128
        %688 = vxpose.xlu0.b32.end [16/16] 0.0, 128
        %v689 = vpop.trf.xlu0
        %v690 = vpop.trf.xlu0
        %v691 = vpop.trf.xlu0
        %v692 = vpop.trf.xlu0
        %v693 = vpop.trf.xlu0
        %v694 = vpop.trf.xlu0
        %v695 = vpop.trf.xlu0
        %v696 = vpop.trf.xlu0
        %v697 = vpop.trf.xlu0
        %v698 = vpop.trf.xlu0
        %v699 = vpop.trf.xlu0
        %v700 = vpop.trf.xlu0
        %v701 = vpop.trf.xlu0
        %v702 = vpop.trf.xlu0
        %v703 = vpop.trf.xlu0
        %v704 = vpop.trf.xlu0
        %v705 = vrsqrt.pop %v689
        %v706 = vmul.f32 %v705, %v689
        %v707 = vmul.f32 %v706, %v705
        %v708 = vmul.f32 0.5, %v707
        %v709 = vsub.f32 1.5, %v708
        %v710 = vmul.f32 %v705, %v709
        %v711 = vmul.f32 %v689, %v710
        %vm712 = vcmp.eq.f32.partialorder %v689, inf
        %v713 = vsel %vm712, %v689, %v711
        %vm714 = vcmp.eq.f32.partialorder %v689, 0.0
        %v715 = vand.u32 %v689, 2147483648
        %v716 = vsel %vm714, %v715, %v713
        %v717 = vrsqrt.pop %v690
        %v718 = vmul.f32 %v717, %v690
        %v719 = vmul.f32 %v718, %v717
        %v720 = vmul.f32 0.5, %v719
        %v721 = vsub.f32 1.5, %v720
        %v722 = vmul.f32 %v717, %v721
        %v723 = vmul.f32 %v690, %v722
        %vm724 = vcmp.eq.f32.partialorder %v690, inf
        %v725 = vsel %vm724, %v690, %v723
        %vm726 = vcmp.eq.f32.partialorder %v690, 0.0
        %v727 = vand.u32 %v690, 2147483648
        %v728 = vsel %vm726, %v727, %v725
        %v729 = vrsqrt.pop %v691
        %v730 = vmul.f32 %v729, %v691
        %v731 = vmul.f32 %v730, %v729
        %v732 = vmul.f32 0.5, %v731
        %v733 = vsub.f32 1.5, %v732
        %v734 = vmul.f32 %v729, %v733
        %v735 = vmul.f32 %v691, %v734
        %vm736 = vcmp.eq.f32.partialorder %v691, inf
        %v737 = vsel %vm736, %v691, %v735
        %vm738 = vcmp.eq.f32.partialorder %v691, 0.0
        %v739 = vand.u32 %v691, 2147483648
        %v740 = vsel %vm738, %v739, %v737
        %v741 = vrsqrt.pop %v692
        %v742 = vmul.f32 %v741, %v692
        %v743 = vmul.f32 %v742, %v741
        %v744 = vmul.f32 0.5, %v743
        %v745 = vsub.f32 1.5, %v744
        %v746 = vmul.f32 %v741, %v745
        %v747 = vmul.f32 %v692, %v746
        %vm748 = vcmp.eq.f32.partialorder %v692, inf
        %v749 = vsel %vm748, %v692, %v747
        %vm750 = vcmp.eq.f32.partialorder %v692, 0.0
        %v751 = vand.u32 %v692, 2147483648
        %v752 = vsel %vm750, %v751, %v749
        %v753 = vrsqrt.pop %v693
        %v754 = vmul.f32 %v753, %v693
        %v755 = vmul.f32 %v754, %v753
        %v756 = vmul.f32 0.5, %v755
        %v757 = vsub.f32 1.5, %v756
        %v758 = vmul.f32 %v753, %v757
        %v759 = vmul.f32 %v693, %v758
        %vm760 = vcmp.eq.f32.partialorder %v693, inf
        %v761 = vsel %vm760, %v693, %v759
        %vm762 = vcmp.eq.f32.partialorder %v693, 0.0
        %v763 = vand.u32 %v693, 2147483648
        %v764 = vsel %vm762, %v763, %v761
        %v765 = vrsqrt.pop %v694
        %v766 = vmul.f32 %v765, %v694
        %v767 = vmul.f32 %v766, %v765
        %v768 = vmul.f32 0.5, %v767
        %v769 = vsub.f32 1.5, %v768
        %v770 = vmul.f32 %v765, %v769
        %v771 = vmul.f32 %v694, %v770
        %vm772 = vcmp.eq.f32.partialorder %v694, inf
        %v773 = vsel %vm772, %v694, %v771
        %vm774 = vcmp.eq.f32.partialorder %v694, 0.0
        %v775 = vand.u32 %v694, 2147483648
        %v776 = vsel %vm774, %v775, %v773
        %v777 = vrsqrt.pop %v695
        %v778 = vmul.f32 %v777, %v695
        %v779 = vmul.f32 %v778, %v777
        %v780 = vmul.f32 0.5, %v779
        %v781 = vsub.f32 1.5, %v780
        %v782 = vmul.f32 %v777, %v781
        %v783 = vmul.f32 %v695, %v782
        %vm784 = vcmp.eq.f32.partialorder %v695, inf
        %v785 = vsel %vm784, %v695, %v783
        %vm786 = vcmp.eq.f32.partialorder %v695, 0.0
        %v787 = vand.u32 %v695, 2147483648
        %v788 = vsel %vm786, %v787, %v785
        %v789 = vrsqrt.pop %v696
        %v790 = vmul.f32 %v789, %v696
        %v791 = vmul.f32 %v790, %v789
        %v792 = vmul.f32 0.5, %v791
        %v793 = vsub.f32 1.5, %v792
        %v794 = vmul.f32 %v789, %v793
        %v795 = vmul.f32 %v696, %v794
        %vm796 = vcmp.eq.f32.partialorder %v696, inf
        %v797 = vsel %vm796, %v696, %v795
        %vm798 = vcmp.eq.f32.partialorder %v696, 0.0
        %v799 = vand.u32 %v696, 2147483648
        %v800 = vsel %vm798, %v799, %v797
        %v801 = vrsqrt.pop %v697
        %v802 = vmul.f32 %v801, %v697
        %v803 = vmul.f32 %v802, %v801
        %v804 = vmul.f32 0.5, %v803
        %v805 = vsub.f32 1.5, %v804
        %v806 = vmul.f32 %v801, %v805
        %v807 = vmul.f32 %v697, %v806
        %vm808 = vcmp.eq.f32.partialorder %v697, inf
        %v809 = vsel %vm808, %v697, %v807
        %vm810 = vcmp.eq.f32.partialorder %v697, 0.0
        %v811 = vand.u32 %v697, 2147483648
        %v812 = vsel %vm810, %v811, %v809
        %v813 = vrsqrt.pop %v698
        %v814 = vmul.f32 %v813, %v698
        %v815 = vmul.f32 %v814, %v813
        %v816 = vmul.f32 0.5, %v815
        %v817 = vsub.f32 1.5, %v816
        %v818 = vmul.f32 %v813, %v817
        %v819 = vmul.f32 %v698, %v818
        %vm820 = vcmp.eq.f32.partialorder %v698, inf
        %v821 = vsel %vm820, %v698, %v819
        %vm822 = vcmp.eq.f32.partialorder %v698, 0.0
        %v823 = vand.u32 %v698, 2147483648
        %v824 = vsel %vm822, %v823, %v821
        %v825 = vrsqrt.pop %v699
        %v826 = vmul.f32 %v825, %v699
        %v827 = vmul.f32 %v826, %v825
        %v828 = vmul.f32 0.5, %v827
        %v829 = vsub.f32 1.5, %v828
        %v830 = vmul.f32 %v825, %v829
        %v831 = vmul.f32 %v699, %v830
        %vm832 = vcmp.eq.f32.partialorder %v699, inf
        %v833 = vsel %vm832, %v699, %v831
        %vm834 = vcmp.eq.f32.partialorder %v699, 0.0
        %v835 = vand.u32 %v699, 2147483648
        %v836 = vsel %vm834, %v835, %v833
        %v837 = vrsqrt.pop %v700
        %v838 = vmul.f32 %v837, %v700
        %v839 = vmul.f32 %v838, %v837
        %v840 = vmul.f32 0.5, %v839
        %v841 = vsub.f32 1.5, %v840
        %v842 = vmul.f32 %v837, %v841
        %v843 = vmul.f32 %v700, %v842
        %vm844 = vcmp.eq.f32.partialorder %v700, inf
        %v845 = vsel %vm844, %v700, %v843
        %vm846 = vcmp.eq.f32.partialorder %v700, 0.0
        %v847 = vand.u32 %v700, 2147483648
        %v848 = vsel %vm846, %v847, %v845
        %v849 = vrsqrt.pop %v701
        %v850 = vmul.f32 %v849, %v701
        %v851 = vmul.f32 %v850, %v849
        %v852 = vmul.f32 0.5, %v851
        %v853 = vsub.f32 1.5, %v852
        %v854 = vmul.f32 %v849, %v853
        %v855 = vmul.f32 %v701, %v854
        %vm856 = vcmp.eq.f32.partialorder %v701, inf
        %v857 = vsel %vm856, %v701, %v855
        %vm858 = vcmp.eq.f32.partialorder %v701, 0.0
        %v859 = vand.u32 %v701, 2147483648
        %v860 = vsel %vm858, %v859, %v857
        %v861 = vrsqrt.pop %v702
        %v862 = vmul.f32 %v861, %v702
        %v863 = vmul.f32 %v862, %v861
        %v864 = vmul.f32 0.5, %v863
        %v865 = vsub.f32 1.5, %v864
        %v866 = vmul.f32 %v861, %v865
        %v867 = vmul.f32 %v702, %v866
        %vm868 = vcmp.eq.f32.partialorder %v702, inf
        %v869 = vsel %vm868, %v702, %v867
        %vm870 = vcmp.eq.f32.partialorder %v702, 0.0
        %v871 = vand.u32 %v702, 2147483648
        %v872 = vsel %vm870, %v871, %v869
        %v873 = vrsqrt.pop %v703
        %v874 = vmul.f32 %v873, %v703
        %v875 = vmul.f32 %v874, %v873
        %v876 = vmul.f32 0.5, %v875
        %v877 = vsub.f32 1.5, %v876
        %v878 = vmul.f32 %v873, %v877
        %v879 = vmul.f32 %v703, %v878
        %vm880 = vcmp.eq.f32.partialorder %v703, inf
        %v881 = vsel %vm880, %v703, %v879
        %vm882 = vcmp.eq.f32.partialorder %v703, 0.0
        %v883 = vand.u32 %v703, 2147483648
        %v884 = vsel %vm882, %v883, %v881
        %v885 = vrsqrt.pop %v704
        %v886 = vmul.f32 %v885, %v704
        %v887 = vmul.f32 %v886, %v885
        %v888 = vmul.f32 0.5, %v887
        %v889 = vsub.f32 1.5, %v888
        %v890 = vmul.f32 %v885, %v889
        %v891 = vmul.f32 %v704, %v890
        %vm892 = vcmp.eq.f32.partialorder %v704, inf
        %v893 = vsel %vm892, %v704, %v891
        %vm894 = vcmp.eq.f32.partialorder %v704, 0.0
        %v895 = vand.u32 %v704, 2147483648
        %v896 = vsel %vm894, %v895, %v893
        %v897 = vld [vmem:[%s3] sm:$0xf]
        %v898 = vld [vmem:[%s3 + $0x4] sm:$0xf]
        %v899 = vld [vmem:[%s3 + $0x8] sm:$0xf]
        %v900 = vld [vmem:[%s3 + $0xc] sm:$0xf]
        %v901 = vpack.c.bf16 %v728, %v716
        %v902 = vpack.c.bf16 %v752, %v740
        %v903 = vpack.c.bf16 %v776, %v764
        %v904 = vpack.c.bf16 %v800, %v788
        %v905 = vpack.c.bf16 %v824, %v812
        %v906 = vpack.c.bf16 %v848, %v836
        %v907 = vpack.c.bf16 %v872, %v860
        %v908 = vpack.c.bf16 %v896, %v884
        %v913 = vunpack.c.l.b16 %v897
        %v914 = vunpack.c.l.b16 %v898
        %v915 = vunpack.c.l.b16 %v899
        %v916 = vunpack.c.l.b16 %v900
        %v917 = vpack.c.b16 %v914, %v913
        %v918 = vpack.c.b16 %v916, %v915
        %921 = vmatpush.bf16.msra.mxu0 %v908
        %922 = vmatpush.bf16.msra.mxu0 %v907
        %923 = vmatpush.bf16.msra.mxu0 %v906
        %924 = vmatpush.bf16.msra.mxu0 %v905
        %925 = vmatpush.bf16.msra.mxu0 %v904
        %926 = vmatpush.bf16.msra.mxu0 %v903
        %927 = vmatpush.bf16.msra.mxu0 %v902
        %928 = vmatpush.bf16.msra.mxu0 %v901
        %929 = vmatmul.bf16.gmra.mxu0 %v917
        %v930 = vpop.f32.mrf.mxu0
        %v931 = vadd.f32 0.0, %v930
        %v932 = vpop.f32.mrf.mxu0
        %v933 = vadd.f32 0.0, %v932
        %934 = vmatmul.bf16.gmra.mxu0 %v918
        %v935 = vpop.f32.mrf.mxu0
        %v936 = vadd.f32 0.0, %v935
        %v937 = vpop.f32.mrf.mxu0
        %v938 = vadd.f32 0.0, %v937
        %939 = vdwg.mxu0
        %v940 = vmax.f32 %v931, 1e-05
        %v941 = vmax.f32 %v933, 1e-05
        %v942 = vmax.f32 %v936, 1e-05
        %v943 = vmax.f32 %v938, 1e-05
        %v944 = vlog2.pop %v940
        %v945 = vmul.f32 %v944, 0.6931472
        %v946 = vlog2.pop %v941
        %v947 = vmul.f32 %v946, 0.6931472
        %v948 = vlog2.pop %v942
        %v949 = vmul.f32 %v948, 0.6931472
        %v950 = vlog2.pop %v943
        %v951 = vmul.f32 %v950, 0.6931472
        %vm952 = vcmask 326656
        %953 = vst.msk [vmem:[%s248] sm:$0xff] %vm952, %v945
        %954 = vst.msk [vmem:[%s248 + $0x8] sm:$0xff] %vm952, %v947
        %955 = vst.msk [vmem:[%s248 + $0x10] sm:$0xff] %vm952, %v949
        %956 = vst.msk [vmem:[%s248 + $0x18] sm:$0xff] %vm952, %v951
        %s957 = sand.u32 %s138, 1
        %s958 = scalar_lea.sflag [#allocation3], %s957
        %s959 = sand.u32 %s138, 1
        %s960 = smul.addr %s959, 32
        %s961 = scalar_lea.vmem [#allocation2], %s960
        // Predicated region
        $region37: #{mel_spectrogram.1} parent=35 // pred_check
          %p962 = pneg %p148
        $region38: #{mel_spectrogram.1} parent=35 // pred_check_branch
          %964 = sbr.rel (%p962) target = $region40
        $region39: #{mel_spectrogram.1} parent=35 // pred_region
          %966 = vsyncadd %s958, 0
          %s967 = smul.addr %s22, 4
          %s968 = sadd.s32 %s23, %s967
          %s969 = smul.addr %s968, 8
          %s970 = scalar_lea.hbm %s4, %s969
          %s971 = sshll.u32 %s961, 4
          %s972 = int_to_ptr.vmem [resolvable:$true] %s971
          %s973 = sshll.u32 %s970, 4
          %s974 = int_to_ptr.hbm [resolvable:$true] %s973
          %979 = dma.vmem_to_hbm [thread:$0]  %s972, 512, %s974, %s958, 128, 128, 8
        $region40: #{mel_spectrogram.1} parent=35 // pred_fallthru
          _
      $region36: #{mel_spectrogram.1} parent=5 // pred_fallthru
        _
      %p980 = scmp.le.s32.totalorder 2, %s13
      // Predicated region
      $region41: #{mel_spectrogram.1} parent=5 // pred_check
        %p981 = pneg %p980
      $region42: #{mel_spectrogram.1} parent=5 // pred_check_branch
        %983 = sbr.rel (%p981) target = $region44
      $region43: #{mel_spectrogram.1} parent=5 // pred_region
        %s984 = ssub.s32 %s13, 2
        // Predicated region
        $region45: #{mel_spectrogram.1} parent=43 // pred_check
          %p985 = pneg %p154
        $region46: #{mel_spectrogram.1} parent=43 // pred_check_branch
          %987 = sbr.rel (%p985) target = $region48
        $region47: #{mel_spectrogram.1} parent=43 // pred_region
          %s988 = sand.u32 %s139, 1
          %s989 = scalar_lea.sflag [#allocation3], %s988
          %s990 = sand.u32 %s139, 1
          %s991 = smul.addr %s990, 32
          %s992 = scalar_lea.vmem [#allocation2], %s991
          %994 = dma.done %s989, 512
        $region48: #{mel_spectrogram.1} parent=43 // pred_fallthru
          _
      $region44: #{mel_spectrogram.1} parent=5 // pred_fallthru
        _
    $region6: #{mel_spectrogram.1} parent=1 // loop_footer
      %s17 = sadd.s32 1, %s13
    $region7: #{mel_spectrogram.1} parent=1 // loop_footer_branch
      %12 = sbr.rel target = $region3
    $region8: #{mel_spectrogram.1} parent=1 // loop_exit
      _
    %995 = vsyncpa [#allocation3], 1
    %s996 = scalar_lea.sflag [#allocation3], 1
    %997 = vsyncpa %s996, 1

</llo_original>
